<compile_context>
chip_gen: v7x
topology: tpu7x:2x2x1
jax: 0.10.0
libtpu: 0.0.40
codegen_flags: <defaults>
</compile_context>

<pallas_src>
import functools

import jax
import jax.numpy as jnp
from jax.experimental import pallas as pl
from jax.experimental.pallas import tpu as pltpu


def _round_up(x: int, m: int) -> int:
    return (x + m - 1) // m * m


def _make_fcn_kernel(num_linear_layers: int):
    """Fused kernel: num_linear_layers matmuls with ReLU between them."""

    def kernel(*refs):
        # refs = (x_ref, w0, b0, w1, b1, ..., w_{L-1}, b_{L-1}, out_ref)
        x_ref = refs[0]
        out_ref = refs[-1]
        h = x_ref[...]  # native dtype, no up-cast
        for l in range(num_linear_layers):
            w = refs[1 + 2 * l][...]
            b = refs[2 + 2 * l][...]
            h = jnp.dot(h, w, preferred_element_type=jnp.float32) + b
            if l < num_linear_layers - 1:
                # activation_function == nn.ReLU() in this instantiation
                h = jnp.maximum(h, 0.0)
        out_ref[...] = h.astype(out_ref.dtype)

    return kernel


@functools.partial(jax.jit, static_argnums=(2, 3))
def fcn_forward(x, params_flat, num_linear_layers, block_batch=128):
    """x: (BS, 28, 28); params_flat: tuple (w0, b0, w1, b1, ...) unpadded."""
    bs = x.shape[0]
    k_in = 28 * 28
    x2d = x.reshape(bs, k_in)

    out_features = params_flat[-2].shape[1]  # last weight: (H, 10)
    dtype = x2d.dtype

    # ---- pad feature dims to multiples of 128 (zero padding; exact math) ----
    k_pad = _round_up(k_in, 128)  # 896
    padded_params = []
    padded_shapes = []
    for l in range(num_linear_layers):
        w = params_flat[2 * l]
        b = params_flat[2 * l + 1]
        in_p = _round_up(w.shape[0], 128)
        out_p = _round_up(w.shape[1], 128)
        padded_params.append(
            jnp.pad(w, ((0, in_p - w.shape[0]), (0, out_p - w.shape[1])))
        )
        padded_params.append(jnp.pad(b, ((0, 0), (0, out_p - b.shape[1]))))
        padded_shapes += [(in_p, out_p), (1, out_p)]
    out_pad = padded_shapes[-1][1]  # padded logits width (128)

    # ---- pad batch and pick the batch tile ----
    tb = min(block_batch, _round_up(bs, 8))
    bs_pad = _round_up(bs, tb)
    x2d = jnp.pad(x2d, ((0, bs_pad - bs), (0, k_pad - k_in)))
    grid = (bs_pad // tb,)

    kernel = _make_fcn_kernel(num_linear_layers)

    # x tile streams with the grid; weights/biases use constant block index so
    # they are fetched once and stay resident in VMEM across batch tiles.
    in_specs = [pl.BlockSpec((tb, k_pad), lambda i: (i, 0))]
    for shp in padded_shapes:
        in_specs.append(pl.BlockSpec(shp, lambda i: (0, 0)))
    out_specs = pl.BlockSpec((tb, out_pad), lambda i: (i, 0))

    # ---- explicit VMEM budget (static shapes -> plain Python ints) ----
    elt = jnp.dtype(dtype).itemsize
    param_bytes = sum(r * c for (r, c) in padded_shapes) * elt
    act_bytes = 2 * (tb * k_pad + tb * out_pad) * elt  # double-buffered I/O tiles
    est = 2 * param_bytes + act_bytes + (4 << 20)      # headroom for intermediates
    vmem_limit = min(max(est, 32 << 20), 64 << 20)     # stay within v7x physical VMEM

    out_padded = pl.pallas_call(
        kernel,
        out_shape=jax.ShapeDtypeStruct((bs_pad, out_pad), jnp.float32),
        grid=grid,
        in_specs=in_specs,
        out_specs=out_specs,
        compiler_params=pltpu.CompilerParams(
            dimension_semantics=("parallel",),
            vmem_limit_bytes=vmem_limit,
        ),
    )(x2d, *padded_params)

    return out_padded[:bs, :out_features]


def init_fcn_params(key, hidden_size: int, num_layers: int):
    """torch.nn.Linear-style uniform(+-1/sqrt(fan_in)) init.

    Weights stored as (in_features, out_features); biases as (1, out_features)."""
    if num_layers < 2:
        raise ValueError(
            f"Number of layers must be at least 2, got {num_layers} number of layers"
        )
    dims = [28 * 28] + [hidden_size] * (num_layers - 1) + [10]
    params = []
    for i in range(num_layers):
        fan_in, fan_out = dims[i], dims[i + 1]
        key, kw, kb = jax.random.split(key, 3)
        bound = 1.0 / (fan_in ** 0.5)
        w = jax.random.uniform(kw, (fan_in, fan_out), jnp.float32, -bound, bound)
        b = jax.random.uniform(kb, (1, fan_out), jnp.float32, -bound, bound)
        params += [w, b]
    return tuple(params)


def fcn_reference(x, params_flat, num_linear_layers):
    """Pure-JAX reference for correctness check."""
    h = x.reshape(x.shape[0], -1)
    for l in range(num_linear_layers):
        w = params_flat[2 * l]
        b = params_flat[2 * l + 1]
        h = h @ w + b
        if l < num_linear_layers - 1:
            h = jnp.maximum(h, 0.0)
    return h


if __name__ == "__main__":
    key = jax.random.PRNGKey(0)

    # Case 1: small deterministic instantiation (hidden=32, layers=3, batch=2).
    key, kx1, kp1 = jax.random.split(key, 3)
    x1 = jax.random.normal(kx1, (2, 28, 28), dtype=jnp.float32)
    params1 = init_fcn_params(kp1, hidden_size=32, num_layers=3)
    out1 = jax.block_until_ready(fcn_forward(x1, params1, 3))
    ref1 = fcn_reference(x1, params1, 3)
    assert out1.shape == (2, 10), out1.shape
    assert jnp.allclose(out1, ref1, atol=1e-4, rtol=1e-4), "case1 mismatch vs reference"

    # Case 2: larger batch exercising the batch grid (tiles of 128) + padding.
    key, kx2, kp2 = jax.random.split(key, 3)
    x2 = jax.random.normal(kx2, (300, 28, 28), dtype=jnp.float32)
    params2 = init_fcn_params(kp2, hidden_size=256, num_layers=4)
    out2 = jax.block_until_ready(fcn_forward(x2, params2, 4))
    ref2 = fcn_reference(x2, params2, 4)
    assert out2.shape == (300, 10), out2.shape
    assert jnp.allclose(out2, ref2, atol=1e-3, rtol=1e-3), "case2 mismatch vs reference"

    print("KERNEL_OK")
</pallas_src>

<mosaic_0001>
module attributes {stable_mosaic.version = 11 : i64} {
  func.func @kernel(%arg0: i32, %arg1: memref<8x896xf32, #tpu.memory_space<vmem>>, %arg2: memref<896x128xf32, #tpu.memory_space<vmem>>, %arg3: memref<1x128xf32, #tpu.memory_space<vmem>>, %arg4: memref<128x128xf32, #tpu.memory_space<vmem>>, %arg5: memref<1x128xf32, #tpu.memory_space<vmem>>, %arg6: memref<128x128xf32, #tpu.memory_space<vmem>>, %arg7: memref<1x128xf32, #tpu.memory_space<vmem>>, %arg8: memref<8x128xf32, #tpu.memory_space<vmem>>) attributes {dimension_semantics = [#tpu.dimension_semantics<parallel>], iteration_bounds = array<i64: 1>, scalar_prefetch = 0 : i64, scratch_operands = 0 : i64, tpu.core_type = #tpu.core_type<tc>, window_params = [{transform_indices = @transform_0, window_bounds = array<i64: 8, 896>}, {pipeline_mode = #tpu.pipeline_mode<synchronous>, transform_indices = @transform_1, window_bounds = array<i64: 896, 128>}, {pipeline_mode = #tpu.pipeline_mode<synchronous>, transform_indices = @transform_2, window_bounds = array<i64: 1, 128>}, {pipeline_mode = #tpu.pipeline_mode<synchronous>, transform_indices = @transform_3, window_bounds = array<i64: 128, 128>}, {pipeline_mode = #tpu.pipeline_mode<synchronous>, transform_indices = @transform_4, window_bounds = array<i64: 1, 128>}, {pipeline_mode = #tpu.pipeline_mode<synchronous>, transform_indices = @transform_5, window_bounds = array<i64: 128, 128>}, {pipeline_mode = #tpu.pipeline_mode<synchronous>, transform_indices = @transform_6, window_bounds = array<i64: 1, 128>}, {transform_indices = @transform_7, window_bounds = array<i64: 8, 128>}]} {
    %c0 = arith.constant 0 : index
    %c0_0 = arith.constant 0 : index
    %0 = vector.load %arg1[%c0, %c0_0] : memref<8x896xf32, #tpu.memory_space<vmem>>, vector<8x896xf32>
    %c0_1 = arith.constant 0 : index
    %c0_2 = arith.constant 0 : index
    %1 = vector.load %arg2[%c0_1, %c0_2] : memref<896x128xf32, #tpu.memory_space<vmem>>, vector<896x128xf32>
    %c0_3 = arith.constant 0 : index
    %c0_4 = arith.constant 0 : index
    %2 = vector.load %arg3[%c0_3, %c0_4] : memref<1x128xf32, #tpu.memory_space<vmem>>, vector<1x128xf32>
    %cst = arith.constant dense<0.000000e+00> : vector<8x128xf32>
    %3 = tpu.matmul %0, %1, %cst {dimension_numbers = #tpu.dot_dimension_numbers<[1], [0], [0], [1], [0, 0, 1, 1], [], []>} : vector<8x896xf32>, vector<896x128xf32>, vector<8x128xf32> -> vector<8x128xf32>
    %4 = vector.broadcast %2 : vector<1x128xf32> to vector<8x128xf32>
    %5 = arith.addf %3, %4 : vector<8x128xf32>
    %cst_5 = arith.constant 0.000000e+00 : f32
    %6 = vector.broadcast %cst_5 : f32 to vector<8x128xf32>
    %7 = arith.maximumf %5, %6 : vector<8x128xf32>
    %c0_6 = arith.constant 0 : index
    %c0_7 = arith.constant 0 : index
    %8 = vector.load %arg4[%c0_6, %c0_7] : memref<128x128xf32, #tpu.memory_space<vmem>>, vector<128x128xf32>
    %c0_8 = arith.constant 0 : index
    %c0_9 = arith.constant 0 : index
    %9 = vector.load %arg5[%c0_8, %c0_9] : memref<1x128xf32, #tpu.memory_space<vmem>>, vector<1x128xf32>
    %cst_10 = arith.constant dense<0.000000e+00> : vector<8x128xf32>
    %10 = tpu.matmul %7, %8, %cst_10 {dimension_numbers = #tpu.dot_dimension_numbers<[1], [0], [0], [1], [0, 0, 1, 1], [], []>} : vector<8x128xf32>, vector<128x128xf32>, vector<8x128xf32> -> vector<8x128xf32>
    %11 = vector.broadcast %9 : vector<1x128xf32> to vector<8x128xf32>
    %12 = arith.addf %10, %11 : vector<8x128xf32>
    %cst_11 = arith.constant 0.000000e+00 : f32
    %13 = vector.broadcast %cst_11 : f32 to vector<8x128xf32>
    %14 = arith.maximumf %12, %13 : vector<8x128xf32>
    %c0_12 = arith.constant 0 : index
    %c0_13 = arith.constant 0 : index
    %15 = vector.load %arg6[%c0_12, %c0_13] : memref<128x128xf32, #tpu.memory_space<vmem>>, vector<128x128xf32>
    %c0_14 = arith.constant 0 : index
    %c0_15 = arith.constant 0 : index
    %16 = vector.load %arg7[%c0_14, %c0_15] : memref<1x128xf32, #tpu.memory_space<vmem>>, vector<1x128xf32>
    %cst_16 = arith.constant dense<0.000000e+00> : vector<8x128xf32>
    %17 = tpu.matmul %14, %15, %cst_16 {dimension_numbers = #tpu.dot_dimension_numbers<[1], [0], [0], [1], [0, 0, 1, 1], [], []>} : vector<8x128xf32>, vector<128x128xf32>, vector<8x128xf32> -> vector<8x128xf32>
    %18 = vector.broadcast %16 : vector<1x128xf32> to vector<8x128xf32>
    %19 = arith.addf %17, %18 : vector<8x128xf32>
    %c0_17 = arith.constant 0 : index
    %c0_18 = arith.constant 0 : index
    %20 = vector.load %arg8[%c0_17, %c0_18] : memref<8x128xf32, #tpu.memory_space<vmem>>, vector<8x128xf32>
    tpu.vector_store %arg8[%c0_17, %c0_18], %19 {strides = array<i32>} : memref<8x128xf32, #tpu.memory_space<vmem>>, vector<8x128xf32>,
    return
  }
  func.func @transform_0(%arg0: i32) -> (i32, i32) {
    %c0_i32 = arith.constant 0 : i32
    %c0_i32_0 = arith.constant 0 : i32
    return %arg0, %c0_i32 : i32, i32
  }
  func.func @transform_1(%arg0: i32) -> (i32, i32) {
    %c0_i32 = arith.constant 0 : i32
    %c0_i32_0 = arith.constant 0 : i32
    %c0_i32_1 = arith.constant 0 : i32
    return %c0_i32, %c0_i32_0 : i32, i32
  }
  func.func @transform_2(%arg0: i32) -> (i32, i32) {
    %c0_i32 = arith.constant 0 : i32
    %c0_i32_0 = arith.constant 0 : i32
    %c0_i32_1 = arith.constant 0 : i32
    return %c0_i32, %c0_i32_0 : i32, i32
  }
  func.func @transform_3(%arg0: i32) -> (i32, i32) {
    %c0_i32 = arith.constant 0 : i32
    %c0_i32_0 = arith.constant 0 : i32
    %c0_i32_1 = arith.constant 0 : i32
    return %c0_i32, %c0_i32_0 : i32, i32
  }
  func.func @transform_4(%arg0: i32) -> (i32, i32) {
    %c0_i32 = arith.constant 0 : i32
    %c0_i32_0 = arith.constant 0 : i32
    %c0_i32_1 = arith.constant 0 : i32
    return %c0_i32, %c0_i32_0 : i32, i32
  }
  func.func @transform_5(%arg0: i32) -> (i32, i32) {
    %c0_i32 = arith.constant 0 : i32
    %c0_i32_0 = arith.constant 0 : i32
    %c0_i32_1 = arith.constant 0 : i32
    return %c0_i32, %c0_i32_0 : i32, i32
  }
  func.func @transform_6(%arg0: i32) -> (i32, i32) {
    %c0_i32 = arith.constant 0 : i32
    %c0_i32_0 = arith.constant 0 : i32
    %c0_i32_1 = arith.constant 0 : i32
    return %c0_i32, %c0_i32_0 : i32, i32
  }
  func.func @transform_7(%arg0: i32) -> (i32, i32) {
    %c0_i32 = arith.constant 0 : i32
    %c0_i32_0 = arith.constant 0 : i32
    return %arg0, %c0_i32 : i32, i32
  }
}

</mosaic_0001>

<llo_original>
// kernel: fcn_forward.1
$region0: #{fcn_forward.1}
  #allocation0 [shape = 'u32[]', space=smem, size = 0x4, offset = 0x4, fixed_abs, tag = 'smem constant byte address 0x4 - core index']
  #allocation1 [shape = 'u32[144,128]{1,0:T(1,128)}', space=vmem, size = 0x12000, scoped, tag = 'internal scratch']
  %s0 = inlined_call_operand.vmem [shape: f32[8,896], index: 0, kind: input, shape index: {}]
  %s1 = inlined_call_operand.vmem [shape: f32[896,128], index: 1, kind: input, shape index: {}]
  %s2 = inlined_call_operand.vmem [shape: f32[1,128], index: 2, kind: input, shape index: {}]
  %s3 = inlined_call_operand.vmem [shape: f32[128,128], index: 3, kind: input, shape index: {}]
  %s4 = inlined_call_operand.vmem [shape: f32[1,128], index: 4, kind: input, shape index: {}]
  %s5 = inlined_call_operand.vmem [shape: f32[128,128], index: 5, kind: input, shape index: {}]
  %s6 = inlined_call_operand.vmem [shape: f32[1,128], index: 6, kind: input, shape index: {}]
  %s7 = inlined_call_operand.vmem [shape: f32[8,128], index: 7, kind: output, shape index: {}]
  %s8 = sld [smem:[#allocation0]]
  $region38: #{fcn_forward.1} parent=0
    _
  %s10 = ssub.s32 1, %s8
  %s11 = scalar_select 0, %s10, %s8
  // Predicated region
  $region2: #{fcn_forward.1} parent=0 // pred_check
    _
  $region3: #{fcn_forward.1} parent=0 // pred_check_branch
    %13 = sbr.rel (0) target = $region5
  $region4: #{fcn_forward.1} parent=0 // pred_region
    _
  $region5: #{fcn_forward.1} parent=0 // pred_fallthru
    _
  // Predicated region
  $region6: #{fcn_forward.1} parent=0 // pred_check
    _
  $region7: #{fcn_forward.1} parent=0 // pred_check_branch
    %15 = sbr.rel (0) target = $region9
  $region8: #{fcn_forward.1} parent=0 // pred_region
    _
  $region9: #{fcn_forward.1} parent=0 // pred_fallthru
    _
  // Predicated region
  $region10: #{fcn_forward.1} parent=0 // pred_check
    _
  $region11: #{fcn_forward.1} parent=0 // pred_check_branch
    %17 = sbr.rel (0) target = $region13
  $region12: #{fcn_forward.1} parent=0 // pred_region
    _
  $region13: #{fcn_forward.1} parent=0 // pred_fallthru
    _
  // Predicated region
  $region14: #{fcn_forward.1} parent=0 // pred_check
    _
  $region15: #{fcn_forward.1} parent=0 // pred_check_branch
    %19 = sbr.rel (0) target = $region17
  $region16: #{fcn_forward.1} parent=0 // pred_region
    _
  $region17: #{fcn_forward.1} parent=0 // pred_fallthru
    _
  // Predicated region
  $region18: #{fcn_forward.1} parent=0 // pred_check
    _
  $region19: #{fcn_forward.1} parent=0 // pred_check_branch
    %21 = sbr.rel (0) target = $region21
  $region20: #{fcn_forward.1} parent=0 // pred_region
    _
  $region21: #{fcn_forward.1} parent=0 // pred_fallthru
    _
  // Predicated region
  $region22: #{fcn_forward.1} parent=0 // pred_check
    _
  $region23: #{fcn_forward.1} parent=0 // pred_check_branch
    %23 = sbr.rel (0) target = $region25
  $region24: #{fcn_forward.1} parent=0 // pred_region
    _
  $region25: #{fcn_forward.1} parent=0 // pred_fallthru
    _
  // Predicated region
  $region26: #{fcn_forward.1} parent=0 // pred_check
    _
  $region27: #{fcn_forward.1} parent=0 // pred_check_branch
    %25 = sbr.rel (0) target = $region29
  $region28: #{fcn_forward.1} parent=0 // pred_region
    _
  $region29: #{fcn_forward.1} parent=0 // pred_fallthru
    _
  %v26 = vld [vmem:[%s0] sm:$0xff]
  %v27 = vld [vmem:[%s0 + $0x8] sm:$0xff]
  %v28 = vld [vmem:[%s0 + $0x10] sm:$0xff]
  %v29 = vld [vmem:[%s0 + $0x18] sm:$0xff]
  %v30 = vld [vmem:[%s0 + $0x20] sm:$0xff]
  %v31 = vld [vmem:[%s0 + $0x28] sm:$0xff]
  %v32 = vld [vmem:[%s0 + $0x30] sm:$0xff]
  %v33 = vld [vmem:[%s1] sm:$0xff]
  %v34 = vld [vmem:[%s1 + $0x8] sm:$0xff]
  %v35 = vld [vmem:[%s1 + $0x10] sm:$0xff]
  %v36 = vld [vmem:[%s1 + $0x18] sm:$0xff]
  %v37 = vld [vmem:[%s1 + $0x20] sm:$0xff]
  %v38 = vld [vmem:[%s1 + $0x28] sm:$0xff]
  %v39 = vld [vmem:[%s1 + $0x30] sm:$0xff]
  %v40 = vld [vmem:[%s1 + $0x38] sm:$0xff]
  %v41 = vld [vmem:[%s1 + $0x40] sm:$0xff]
  %v42 = vld [vmem:[%s1 + $0x48] sm:$0xff]
  %v43 = vld [vmem:[%s1 + $0x50] sm:$0xff]
  %v44 = vld [vmem:[%s1 + $0x58] sm:$0xff]
  %v45 = vld [vmem:[%s1 + $0x60] sm:$0xff]
  %v46 = vld [vmem:[%s1 + $0x68] sm:$0xff]
  %v47 = vld [vmem:[%s1 + $0x70] sm:$0xff]
  %v48 = vld [vmem:[%s1 + $0x78] sm:$0xff]
  %v49 = vld [vmem:[%s1 + $0x80] sm:$0xff]
  %v50 = vld [vmem:[%s1 + $0x88] sm:$0xff]
  %v51 = vld [vmem:[%s1 + $0x90] sm:$0xff]
  %v52 = vld [vmem:[%s1 + $0x98] sm:$0xff]
  %v53 = vld [vmem:[%s1 + $0xa0] sm:$0xff]
  %v54 = vld [vmem:[%s1 + $0xa8] sm:$0xff]
  %v55 = vld [vmem:[%s1 + $0xb0] sm:$0xff]
  %v56 = vld [vmem:[%s1 + $0xb8] sm:$0xff]
  %v57 = vld [vmem:[%s1 + $0xc0] sm:$0xff]
  %v58 = vld [vmem:[%s1 + $0xc8] sm:$0xff]
  %v59 = vld [vmem:[%s1 + $0xd0] sm:$0xff]
  %v60 = vld [vmem:[%s1 + $0xd8] sm:$0xff]
  %v61 = vld [vmem:[%s1 + $0xe0] sm:$0xff]
  %v62 = vld [vmem:[%s1 + $0xe8] sm:$0xff]
  %v63 = vld [vmem:[%s1 + $0xf0] sm:$0xff]
  %v64 = vld [vmem:[%s1 + $0xf8] sm:$0xff]
  %v65 = vld [vmem:[%s1 + $0x100] sm:$0xff]
  %v66 = vld [vmem:[%s1 + $0x108] sm:$0xff]
  %v67 = vld [vmem:[%s1 + $0x110] sm:$0xff]
  %v68 = vld [vmem:[%s1 + $0x118] sm:$0xff]
  %v69 = vld [vmem:[%s1 + $0x120] sm:$0xff]
  %v70 = vld [vmem:[%s1 + $0x128] sm:$0xff]
  %v71 = vld [vmem:[%s1 + $0x130] sm:$0xff]
  %v72 = vld [vmem:[%s1 + $0x138] sm:$0xff]
  %v73 = vld [vmem:[%s1 + $0x140] sm:$0xff]
  %v74 = vld [vmem:[%s1 + $0x148] sm:$0xff]
  %v75 = vld [vmem:[%s1 + $0x150] sm:$0xff]
  %v76 = vld [vmem:[%s1 + $0x158] sm:$0xff]
  %v77 = vld [vmem:[%s1 + $0x160] sm:$0xff]
  %v78 = vld [vmem:[%s1 + $0x168] sm:$0xff]
  %v79 = vld [vmem:[%s1 + $0x170] sm:$0xff]
  %v80 = vld [vmem:[%s1 + $0x178] sm:$0xff]
  %v81 = vld [vmem:[%s1 + $0x180] sm:$0xff]
  %v82 = vld [vmem:[%s1 + $0x188] sm:$0xff]
  %v83 = vld [vmem:[%s1 + $0x190] sm:$0xff]
  %v84 = vld [vmem:[%s1 + $0x198] sm:$0xff]
  %v85 = vld [vmem:[%s1 + $0x1a0] sm:$0xff]
  %v86 = vld [vmem:[%s1 + $0x1a8] sm:$0xff]
  %v87 = vld [vmem:[%s1 + $0x1b0] sm:$0xff]
  %v88 = vld [vmem:[%s1 + $0x1b8] sm:$0xff]
  %v89 = vld [vmem:[%s1 + $0x1c0] sm:$0xff]
  %v90 = vld [vmem:[%s1 + $0x1c8] sm:$0xff]
  %v91 = vld [vmem:[%s1 + $0x1d0] sm:$0xff]
  %v92 = vld [vmem:[%s1 + $0x1d8] sm:$0xff]
  %v93 = vld [vmem:[%s1 + $0x1e0] sm:$0xff]
  %v94 = vld [vmem:[%s1 + $0x1e8] sm:$0xff]
  %v95 = vld [vmem:[%s1 + $0x1f0] sm:$0xff]
  %v96 = vld [vmem:[%s1 + $0x1f8] sm:$0xff]
  %v97 = vld [vmem:[%s1 + $0x200] sm:$0xff]
  %v98 = vld [vmem:[%s1 + $0x208] sm:$0xff]
  %v99 = vld [vmem:[%s1 + $0x210] sm:$0xff]
  %v100 = vld [vmem:[%s1 + $0x218] sm:$0xff]
  %v101 = vld [vmem:[%s1 + $0x220] sm:$0xff]
  %v102 = vld [vmem:[%s1 + $0x228] sm:$0xff]
  %v103 = vld [vmem:[%s1 + $0x230] sm:$0xff]
  %v104 = vld [vmem:[%s1 + $0x238] sm:$0xff]
  %v105 = vld [vmem:[%s1 + $0x240] sm:$0xff]
  %v106 = vld [vmem:[%s1 + $0x248] sm:$0xff]
  %v107 = vld [vmem:[%s1 + $0x250] sm:$0xff]
  %v108 = vld [vmem:[%s1 + $0x258] sm:$0xff]
  %v109 = vld [vmem:[%s1 + $0x260] sm:$0xff]
  %v110 = vld [vmem:[%s1 + $0x268] sm:$0xff]
  %v111 = vld [vmem:[%s1 + $0x270] sm:$0xff]
  %v112 = vld [vmem:[%s1 + $0x278] sm:$0xff]
  %v113 = vld [vmem:[%s1 + $0x280] sm:$0xff]
  %v114 = vld [vmem:[%s1 + $0x288] sm:$0xff]
  %v115 = vld [vmem:[%s1 + $0x290] sm:$0xff]
  %v116 = vld [vmem:[%s1 + $0x298] sm:$0xff]
  %v117 = vld [vmem:[%s1 + $0x2a0] sm:$0xff]
  %v118 = vld [vmem:[%s1 + $0x2a8] sm:$0xff]
  %v119 = vld [vmem:[%s1 + $0x2b0] sm:$0xff]
  %v120 = vld [vmem:[%s1 + $0x2b8] sm:$0xff]
  %v121 = vld [vmem:[%s1 + $0x2c0] sm:$0xff]
  %v122 = vld [vmem:[%s1 + $0x2c8] sm:$0xff]
  %v123 = vld [vmem:[%s1 + $0x2d0] sm:$0xff]
  %v124 = vld [vmem:[%s1 + $0x2d8] sm:$0xff]
  %v125 = vld [vmem:[%s1 + $0x2e0] sm:$0xff]
  %v126 = vld [vmem:[%s1 + $0x2e8] sm:$0xff]
  %v127 = vld [vmem:[%s1 + $0x2f0] sm:$0xff]
  %v128 = vld [vmem:[%s1 + $0x2f8] sm:$0xff]
  %v129 = vld [vmem:[%s1 + $0x300] sm:$0xff]
  %v130 = vld [vmem:[%s1 + $0x308] sm:$0xff]
  %v131 = vld [vmem:[%s1 + $0x310] sm:$0xff]
  %v132 = vld [vmem:[%s1 + $0x318] sm:$0xff]
  %v133 = vld [vmem:[%s1 + $0x320] sm:$0xff]
  %v134 = vld [vmem:[%s1 + $0x328] sm:$0xff]
  %v135 = vld [vmem:[%s1 + $0x330] sm:$0xff]
  %v136 = vld [vmem:[%s1 + $0x338] sm:$0xff]
  %v137 = vld [vmem:[%s1 + $0x340] sm:$0xff]
  %v138 = vld [vmem:[%s1 + $0x348] sm:$0xff]
  %v139 = vld [vmem:[%s1 + $0x350] sm:$0xff]
  %v140 = vld [vmem:[%s1 + $0x358] sm:$0xff]
  %v141 = vld [vmem:[%s1 + $0x360] sm:$0xff]
  %v142 = vld [vmem:[%s1 + $0x368] sm:$0xff]
  %v143 = vld [vmem:[%s1 + $0x370] sm:$0xff]
  %v144 = vld [vmem:[%s1 + $0x378] sm:$0xff]
  %v145 = vld [vmem:[%s2] sm:$0x1]
  %v147 = vlaneseq
  %v148 = vshrl.u32 %v147, 7
  %v149 = vsub.s32 0, %v148
  %v150 = vrot.slane %v145, %v149
  %152 = vmatprep.subr.mxu0 0.0
  %153 = vmatpush1.msra.mxu0 %v33
  %154 = vmatprep.subr.mxu0 0.0
  %155 = vmatpush1.msra.mxu0 %v34
  %156 = vmatprep.subr.mxu0 0.0
  %157 = vmatpush1.msra.mxu0 %v35
  %158 = vmatprep.subr.mxu0 0.0
  %159 = vmatpush1.msra.mxu0 %v36
  %160 = vmatprep.subr.mxu0 0.0
  %161 = vmatpush1.msra.mxu0 %v37
  %162 = vmatprep.subr.mxu0 0.0
  %163 = vmatpush1.msra.mxu0 %v38
  %164 = vmatprep.subr.mxu0 0.0
  %165 = vmatpush1.msra.mxu0 %v39
  %166 = vmatprep.subr.mxu0 0.0
  %167 = vmatpush1.msra.mxu0 %v40
  %168 = vmatprep.subr.mxu0 0.0
  %169 = vmatpush1.msra.mxu0 %v41
  %170 = vmatprep.subr.mxu0 0.0
  %171 = vmatpush1.msra.mxu0 %v42
  %172 = vmatprep.subr.mxu0 0.0
  %173 = vmatpush1.msra.mxu0 %v43
  %174 = vmatprep.subr.mxu0 0.0
  %175 = vmatpush1.msra.mxu0 %v44
  %176 = vmatprep.subr.mxu0 0.0
  %177 = vmatpush1.msra.mxu0 %v45
  %178 = vmatprep.subr.mxu0 0.0
  %179 = vmatpush1.msra.mxu0 %v46
  %180 = vmatprep.subr.mxu0 0.0
  %181 = vmatpush1.msra.mxu0 %v47
  %182 = vmatprep.subr.mxu0 0.0
  %183 = vmatpush1.msra.mxu0 %v48
  %184 = vmatprep.subr.mxu0 0.0
  %185 = vmatpush1.msra.mxu0 %v49
  %186 = vmatprep.subr.mxu0 0.0
  %187 = vmatpush1.msra.mxu0 %v50
  %188 = vmatprep.subr.mxu0 0.0
  %189 = vmatpush1.msra.mxu0 %v51
  %190 = vmatprep.subr.mxu0 0.0
  %191 = vmatpush1.msra.mxu0 %v52
  %192 = vmatprep.subr.mxu0 0.0
  %193 = vmatpush1.msra.mxu0 %v53
  %194 = vmatprep.subr.mxu0 0.0
  %195 = vmatpush1.msra.mxu0 %v54
  %196 = vmatprep.subr.mxu0 0.0
  %197 = vmatpush1.msra.mxu0 %v55
  %198 = vmatprep.subr.mxu0 0.0
  %199 = vmatpush1.msra.mxu0 %v56
  %200 = vmatprep.subr.mxu0 0.0
  %201 = vmatpush1.msra.mxu0 %v57
  %202 = vmatprep.subr.mxu0 0.0
  %203 = vmatpush1.msra.mxu0 %v58
  %204 = vmatprep.subr.mxu0 0.0
  %205 = vmatpush1.msra.mxu0 %v59
  %206 = vmatprep.subr.mxu0 0.0
  %207 = vmatpush1.msra.mxu0 %v60
  %208 = vmatprep.subr.mxu0 0.0
  %209 = vmatpush1.msra.mxu0 %v61
  %210 = vmatprep.subr.mxu0 0.0
  %211 = vmatpush1.msra.mxu0 %v62
  %212 = vmatprep.subr.mxu0 0.0
  %213 = vmatpush1.msra.mxu0 %v63
  %214 = vmatprep.subr.mxu0 0.0
  %215 = vmatpush1.msra.mxu0 %v64
  %216 = vmatprep.mubr.f32.mxu0 %v27
  %217 = vmatmul.mubr.f32.gmra.mrb[0].mxu0 %v26
  %v218 = vpop.f32.mrb[0].mxu0
  %v219 = vadd.f32 %v150, %v218
  %v220 = vpop.f32.mrb[0].mxu0
  %221 = vdwg.mxu0
  %222 = vmatprep.subr.mxu0 0.0
  %223 = vmatpush1.msra.mxu0 %v65
  %224 = vmatprep.subr.mxu0 0.0
  %225 = vmatpush1.msra.mxu0 %v66
  %226 = vmatprep.subr.mxu0 0.0
  %227 = vmatpush1.msra.mxu0 %v67
  %228 = vmatprep.subr.mxu0 0.0
  %229 = vmatpush1.msra.mxu0 %v68
  %230 = vmatprep.subr.mxu0 0.0
  %231 = vmatpush1.msra.mxu0 %v69
  %232 = vmatprep.subr.mxu0 0.0
  %233 = vmatpush1.msra.mxu0 %v70
  %234 = vmatprep.subr.mxu0 0.0
  %235 = vmatpush1.msra.mxu0 %v71
  %236 = vmatprep.subr.mxu0 0.0
  %237 = vmatpush1.msra.mxu0 %v72
  %238 = vmatprep.subr.mxu0 0.0
  %239 = vmatpush1.msra.mxu0 %v73
  %240 = vmatprep.subr.mxu0 0.0
  %241 = vmatpush1.msra.mxu0 %v74
  %242 = vmatprep.subr.mxu0 0.0
  %243 = vmatpush1.msra.mxu0 %v75
  %244 = vmatprep.subr.mxu0 0.0
  %245 = vmatpush1.msra.mxu0 %v76
  %246 = vmatprep.subr.mxu0 0.0
  %247 = vmatpush1.msra.mxu0 %v77
  %248 = vmatprep.subr.mxu0 0.0
  %249 = vmatpush1.msra.mxu0 %v78
  %250 = vmatprep.subr.mxu0 0.0
  %251 = vmatpush1.msra.mxu0 %v79
  %252 = vmatprep.subr.mxu0 0.0
  %253 = vmatpush1.msra.mxu0 %v80
  %254 = vmatprep.subr.mxu0 0.0
  %255 = vmatpush1.msra.mxu0 %v81
  %256 = vmatprep.subr.mxu0 0.0
  %257 = vmatpush1.msra.mxu0 %v82
  %258 = vmatprep.subr.mxu0 0.0
  %259 = vmatpush1.msra.mxu0 %v83
  %260 = vmatprep.subr.mxu0 0.0
  %261 = vmatpush1.msra.mxu0 %v84
  %262 = vmatprep.subr.mxu0 0.0
  %263 = vmatpush1.msra.mxu0 %v85
  %264 = vmatprep.subr.mxu0 0.0
  %265 = vmatpush1.msra.mxu0 %v86
  %266 = vmatprep.subr.mxu0 0.0
  %267 = vmatpush1.msra.mxu0 %v87
  %268 = vmatprep.subr.mxu0 0.0
  %269 = vmatpush1.msra.mxu0 %v88
  %270 = vmatprep.subr.mxu0 0.0
  %271 = vmatpush1.msra.mxu0 %v89
  %272 = vmatprep.subr.mxu0 0.0
  %273 = vmatpush1.msra.mxu0 %v90
  %274 = vmatprep.subr.mxu0 0.0
  %275 = vmatpush1.msra.mxu0 %v91
  %276 = vmatprep.subr.mxu0 0.0
  %277 = vmatpush1.msra.mxu0 %v92
  %278 = vmatprep.subr.mxu0 0.0
  %279 = vmatpush1.msra.mxu0 %v93
  %280 = vmatprep.subr.mxu0 0.0
  %281 = vmatpush1.msra.mxu0 %v94
  %282 = vmatprep.subr.mxu0 0.0
  %283 = vmatpush1.msra.mxu0 %v95
  %284 = vmatprep.subr.mxu0 0.0
  %285 = vmatpush1.msra.mxu0 %v96
  %286 = vmatprep.mubr.f32.mxu0 %v29
  %287 = vmatmul.mubr.f32.gmra.mrb[0].mxu0 %v28
  %v288 = vpop.f32.mrb[0].mxu0
  %v289 = vadd.f32 %v219, %v288
  %v290 = vpop.f32.mrb[0].mxu0
  %291 = vdwg.mxu0
  %292 = vmatprep.subr.mxu0 0.0
  %293 = vmatpush1.msra.mxu0 %v97
  %294 = vmatprep.subr.mxu0 0.0
  %295 = vmatpush1.msra.mxu0 %v98
  %296 = vmatprep.subr.mxu0 0.0
  %297 = vmatpush1.msra.mxu0 %v99
  %298 = vmatprep.subr.mxu0 0.0
  %299 = vmatpush1.msra.mxu0 %v100
  %300 = vmatprep.subr.mxu0 0.0
  %301 = vmatpush1.msra.mxu0 %v101
  %302 = vmatprep.subr.mxu0 0.0
  %303 = vmatpush1.msra.mxu0 %v102
  %304 = vmatprep.subr.mxu0 0.0
  %305 = vmatpush1.msra.mxu0 %v103
  %306 = vmatprep.subr.mxu0 0.0
  %307 = vmatpush1.msra.mxu0 %v104
  %308 = vmatprep.subr.mxu0 0.0
  %309 = vmatpush1.msra.mxu0 %v105
  %310 = vmatprep.subr.mxu0 0.0
  %311 = vmatpush1.msra.mxu0 %v106
  %312 = vmatprep.subr.mxu0 0.0
  %313 = vmatpush1.msra.mxu0 %v107
  %314 = vmatprep.subr.mxu0 0.0
  %315 = vmatpush1.msra.mxu0 %v108
  %316 = vmatprep.subr.mxu0 0.0
  %317 = vmatpush1.msra.mxu0 %v109
  %318 = vmatprep.subr.mxu0 0.0
  %319 = vmatpush1.msra.mxu0 %v110
  %320 = vmatprep.subr.mxu0 0.0
  %321 = vmatpush1.msra.mxu0 %v111
  %322 = vmatprep.subr.mxu0 0.0
  %323 = vmatpush1.msra.mxu0 %v112
  %324 = vmatprep.subr.mxu0 0.0
  %325 = vmatpush1.msra.mxu0 %v113
  %326 = vmatprep.subr.mxu0 0.0
  %327 = vmatpush1.msra.mxu0 %v114
  %328 = vmatprep.subr.mxu0 0.0
  %329 = vmatpush1.msra.mxu0 %v115
  %330 = vmatprep.subr.mxu0 0.0
  %331 = vmatpush1.msra.mxu0 %v116
  %332 = vmatprep.subr.mxu0 0.0
  %333 = vmatpush1.msra.mxu0 %v117
  %334 = vmatprep.subr.mxu0 0.0
  %335 = vmatpush1.msra.mxu0 %v118
  %336 = vmatprep.subr.mxu0 0.0
  %337 = vmatpush1.msra.mxu0 %v119
  %338 = vmatprep.subr.mxu0 0.0
  %339 = vmatpush1.msra.mxu0 %v120
  %340 = vmatprep.subr.mxu0 0.0
  %341 = vmatpush1.msra.mxu0 %v121
  %342 = vmatprep.subr.mxu0 0.0
  %343 = vmatpush1.msra.mxu0 %v122
  %344 = vmatprep.subr.mxu0 0.0
  %345 = vmatpush1.msra.mxu0 %v123
  %346 = vmatprep.subr.mxu0 0.0
  %347 = vmatpush1.msra.mxu0 %v124
  %348 = vmatprep.subr.mxu0 0.0
  %349 = vmatpush1.msra.mxu0 %v125
  %350 = vmatprep.subr.mxu0 0.0
  %351 = vmatpush1.msra.mxu0 %v126
  %352 = vmatprep.subr.mxu0 0.0
  %353 = vmatpush1.msra.mxu0 %v127
  %354 = vmatprep.subr.mxu0 0.0
  %355 = vmatpush1.msra.mxu0 %v128
  %356 = vmatprep.mubr.f32.mxu0 %v31
  %357 = vmatmul.mubr.f32.gmra.mrb[0].mxu0 %v30
  %v358 = vpop.f32.mrb[0].mxu0
  %v359 = vadd.f32 %v289, %v358
  %v360 = vpop.f32.mrb[0].mxu0
  %361 = vdwg.mxu0
  %362 = vmatprep.subr.mxu0 0.0
  %363 = vmatpush1.msra.mxu0 %v129
  %364 = vmatprep.subr.mxu0 0.0
  %365 = vmatpush1.msra.mxu0 %v130
  %366 = vmatprep.subr.mxu0 0.0
  %367 = vmatpush1.msra.mxu0 %v131
  %368 = vmatprep.subr.mxu0 0.0
  %369 = vmatpush1.msra.mxu0 %v132
  %370 = vmatprep.subr.mxu0 0.0
  %371 = vmatpush1.msra.mxu0 %v133
  %372 = vmatprep.subr.mxu0 0.0
  %373 = vmatpush1.msra.mxu0 %v134
  %374 = vmatprep.subr.mxu0 0.0
  %375 = vmatpush1.msra.mxu0 %v135
  %376 = vmatprep.subr.mxu0 0.0
  %377 = vmatpush1.msra.mxu0 %v136
  %378 = vmatprep.subr.mxu0 0.0
  %379 = vmatpush1.msra.mxu0 %v137
  %380 = vmatprep.subr.mxu0 0.0
  %381 = vmatpush1.msra.mxu0 %v138
  %382 = vmatprep.subr.mxu0 0.0
  %383 = vmatpush1.msra.mxu0 %v139
  %384 = vmatprep.subr.mxu0 0.0
  %385 = vmatpush1.msra.mxu0 %v140
  %386 = vmatprep.subr.mxu0 0.0
  %387 = vmatpush1.msra.mxu0 %v141
  %388 = vmatprep.subr.mxu0 0.0
  %389 = vmatpush1.msra.mxu0 %v142
  %390 = vmatprep.subr.mxu0 0.0
  %391 = vmatpush1.msra.mxu0 %v143
  %392 = vmatprep.subr.mxu0 0.0
  %393 = vmatpush1.msra.mxu0 %v144
  %394 = vmatprep.subr.mxu0 0.0
  %395 = vmatpush1.msra.mxu0 0.0
  %396 = vmatprep.subr.mxu0 0.0
  %397 = vmatpush1.msra.mxu0 0.0
  %398 = vmatprep.subr.mxu0 0.0
  %399 = vmatpush1.msra.mxu0 0.0
  %400 = vmatprep.subr.mxu0 0.0
  %401 = vmatpush1.msra.mxu0 0.0
  %402 = vmatprep.subr.mxu0 0.0
  %403 = vmatpush1.msra.mxu0 0.0
  %404 = vmatprep.subr.mxu0 0.0
  %405 = vmatpush1.msra.mxu0 0.0
  %406 = vmatprep.subr.mxu0 0.0
  %407 = vmatpush1.msra.mxu0 0.0
  %408 = vmatprep.subr.mxu0 0.0
  %409 = vmatpush1.msra.mxu0 0.0
  %410 = vmatprep.subr.mxu0 0.0
  %411 = vmatpush1.msra.mxu0 0.0
  %412 = vmatprep.subr.mxu0 0.0
  %413 = vmatpush1.msra.mxu0 0.0
  %414 = vmatprep.subr.mxu0 0.0
  %415 = vmatpush1.msra.mxu0 0.0
  %416 = vmatprep.subr.mxu0 0.0
  %417 = vmatpush1.msra.mxu0 0.0
  %418 = vmatprep.subr.mxu0 0.0
  %419 = vmatpush1.msra.mxu0 0.0
  %420 = vmatprep.subr.mxu0 0.0
  %421 = vmatpush1.msra.mxu0 0.0
  %422 = vmatprep.subr.mxu0 0.0
  %423 = vmatpush1.msra.mxu0 0.0
  %424 = vmatprep.subr.mxu0 0.0
  %425 = vmatpush1.msra.mxu0 0.0
  %426 = vmatprep.mubr.f32.mxu0 0.0
  %427 = vmatmul.mubr.f32.gmra.mrb[0].mxu0 %v32
  %v428 = vpop.f32.mrb[0].mxu0
  %v429 = vadd.f32 %v359, %v428
  %v430 = vpop.f32.mrb[0].mxu0
  %431 = vdwg.mxu0
  %v432 = vmax.f32 %v429, 0.0
  %v433 = vld [vmem:[%s3] sm:$0xff]
  %v434 = vld [vmem:[%s3 + $0x8] sm:$0xff]
  %v435 = vld [vmem:[%s3 + $0x10] sm:$0xff]
  %v436 = vld [vmem:[%s3 + $0x18] sm:$0xff]
  %v437 = vld [vmem:[%s3 + $0x20] sm:$0xff]
  %v438 = vld [vmem:[%s3 + $0x28] sm:$0xff]
  %v439 = vld [vmem:[%s3 + $0x30] sm:$0xff]
  %v440 = vld [vmem:[%s3 + $0x38] sm:$0xff]
  %v441 = vld [vmem:[%s3 + $0x40] sm:$0xff]
  %v442 = vld [vmem:[%s3 + $0x48] sm:$0xff]
  %v443 = vld [vmem:[%s3 + $0x50] sm:$0xff]
  %v444 = vld [vmem:[%s3 + $0x58] sm:$0xff]
  %v445 = vld [vmem:[%s3 + $0x60] sm:$0xff]
  %v446 = vld [vmem:[%s3 + $0x68] sm:$0xff]
  %v447 = vld [vmem:[%s3 + $0x70] sm:$0xff]
  %v448 = vld [vmem:[%s3 + $0x78] sm:$0xff]
  %v449 = vld [vmem:[%s4] sm:$0x1]
  %v451 = vlaneseq
  %v452 = vshrl.u32 %v451, 7
  %v453 = vsub.s32 0, %v452
  %v454 = vrot.slane %v449, %v453
  %456 = vmatprep.subr.mxu0 0.0
  %457 = vmatpush1.msra.mxu0 %v433
  %458 = vmatprep.subr.mxu0 0.0
  %459 = vmatpush1.msra.mxu0 %v434
  %460 = vmatprep.subr.mxu0 0.0
  %461 = vmatpush1.msra.mxu0 %v435
  %462 = vmatprep.subr.mxu0 0.0
  %463 = vmatpush1.msra.mxu0 %v436
  %464 = vmatprep.subr.mxu0 0.0
  %465 = vmatpush1.msra.mxu0 %v437
  %466 = vmatprep.subr.mxu0 0.0
  %467 = vmatpush1.msra.mxu0 %v438
  %468 = vmatprep.subr.mxu0 0.0
  %469 = vmatpush1.msra.mxu0 %v439
  %470 = vmatprep.subr.mxu0 0.0
  %471 = vmatpush1.msra.mxu0 %v440
  %472 = vmatprep.subr.mxu0 0.0
  %473 = vmatpush1.msra.mxu0 %v441
  %474 = vmatprep.subr.mxu0 0.0
  %475 = vmatpush1.msra.mxu0 %v442
  %476 = vmatprep.subr.mxu0 0.0
  %477 = vmatpush1.msra.mxu0 %v443
  %478 = vmatprep.subr.mxu0 0.0
  %479 = vmatpush1.msra.mxu0 %v444
  %480 = vmatprep.subr.mxu0 0.0
  %481 = vmatpush1.msra.mxu0 %v445
  %482 = vmatprep.subr.mxu0 0.0
  %483 = vmatpush1.msra.mxu0 %v446
  %484 = vmatprep.subr.mxu0 0.0
  %485 = vmatpush1.msra.mxu0 %v447
  %486 = vmatprep.subr.mxu0 0.0
  %487 = vmatpush1.msra.mxu0 %v448
  %488 = vmatprep.subr.mxu0 0.0
  %489 = vmatpush1.msra.mxu0 0.0
  %490 = vmatprep.subr.mxu0 0.0
  %491 = vmatpush1.msra.mxu0 0.0
  %492 = vmatprep.subr.mxu0 0.0
  %493 = vmatpush1.msra.mxu0 0.0
  %494 = vmatprep.subr.mxu0 0.0
  %495 = vmatpush1.msra.mxu0 0.0
  %496 = vmatprep.subr.mxu0 0.0
  %497 = vmatpush1.msra.mxu0 0.0
  %498 = vmatprep.subr.mxu0 0.0
  %499 = vmatpush1.msra.mxu0 0.0
  %500 = vmatprep.subr.mxu0 0.0
  %501 = vmatpush1.msra.mxu0 0.0
  %502 = vmatprep.subr.mxu0 0.0
  %503 = vmatpush1.msra.mxu0 0.0
  %504 = vmatprep.subr.mxu0 0.0
  %505 = vmatpush1.msra.mxu0 0.0
  %506 = vmatprep.subr.mxu0 0.0
  %507 = vmatpush1.msra.mxu0 0.0
  %508 = vmatprep.subr.mxu0 0.0
  %509 = vmatpush1.msra.mxu0 0.0
  %510 = vmatprep.subr.mxu0 0.0
  %511 = vmatpush1.msra.mxu0 0.0
  %512 = vmatprep.subr.mxu0 0.0
  %513 = vmatpush1.msra.mxu0 0.0
  %514 = vmatprep.subr.mxu0 0.0
  %515 = vmatpush1.msra.mxu0 0.0
  %516 = vmatprep.subr.mxu0 0.0
  %517 = vmatpush1.msra.mxu0 0.0
  %518 = vmatprep.subr.mxu0 0.0
  %519 = vmatpush1.msra.mxu0 0.0
  %520 = vmatprep.mubr.f32.mxu0 0.0
  %521 = vmatmul.mubr.f32.gmra.mrb[0].mxu0 %v432
  %v522 = vpop.f32.mrb[0].mxu0
  %v523 = vadd.f32 %v454, %v522
  %v524 = vpop.f32.mrb[0].mxu0
  %525 = vdwg.mxu0
  %v526 = vmax.f32 %v523, 0.0
  %v527 = vld [vmem:[%s5] sm:$0xff]
  %v528 = vld [vmem:[%s5 + $0x8] sm:$0xff]
  %v529 = vld [vmem:[%s5 + $0x10] sm:$0xff]
  %v530 = vld [vmem:[%s5 + $0x18] sm:$0xff]
  %v531 = vld [vmem:[%s5 + $0x20] sm:$0xff]
  %v532 = vld [vmem:[%s5 + $0x28] sm:$0xff]
  %v533 = vld [vmem:[%s5 + $0x30] sm:$0xff]
  %v534 = vld [vmem:[%s5 + $0x38] sm:$0xff]
  %v535 = vld [vmem:[%s5 + $0x40] sm:$0xff]
  %v536 = vld [vmem:[%s5 + $0x48] sm:$0xff]
  %v537 = vld [vmem:[%s5 + $0x50] sm:$0xff]
  %v538 = vld [vmem:[%s5 + $0x58] sm:$0xff]
  %v539 = vld [vmem:[%s5 + $0x60] sm:$0xff]
  %v540 = vld [vmem:[%s5 + $0x68] sm:$0xff]
  %v541 = vld [vmem:[%s5 + $0x70] sm:$0xff]
  %v542 = vld [vmem:[%s5 + $0x78] sm:$0xff]
  %v543 = vld [vmem:[%s6] sm:$0x1]
  %v545 = vlaneseq
  %v546 = vshrl.u32 %v545, 7
  %v547 = vsub.s32 0, %v546
  %v548 = vrot.slane %v543, %v547
  %550 = vmatprep.subr.mxu0 0.0
  %551 = vmatpush1.msra.mxu0 %v527
  %552 = vmatprep.subr.mxu0 0.0
  %553 = vmatpush1.msra.mxu0 %v528
  %554 = vmatprep.subr.mxu0 0.0
  %555 = vmatpush1.msra.mxu0 %v529
  %556 = vmatprep.subr.mxu0 0.0
  %557 = vmatpush1.msra.mxu0 %v530
  %558 = vmatprep.subr.mxu0 0.0
  %559 = vmatpush1.msra.mxu0 %v531
  %560 = vmatprep.subr.mxu0 0.0
  %561 = vmatpush1.msra.mxu0 %v532
  %562 = vmatprep.subr.mxu0 0.0
  %563 = vmatpush1.msra.mxu0 %v533
  %564 = vmatprep.subr.mxu0 0.0
  %565 = vmatpush1.msra.mxu0 %v534
  %566 = vmatprep.subr.mxu0 0.0
  %567 = vmatpush1.msra.mxu0 %v535
  %568 = vmatprep.subr.mxu0 0.0
  %569 = vmatpush1.msra.mxu0 %v536
  %570 = vmatprep.subr.mxu0 0.0
  %571 = vmatpush1.msra.mxu0 %v537
  %572 = vmatprep.subr.mxu0 0.0
  %573 = vmatpush1.msra.mxu0 %v538
  %574 = vmatprep.subr.mxu0 0.0
  %575 = vmatpush1.msra.mxu0 %v539
  %576 = vmatprep.subr.mxu0 0.0
  %577 = vmatpush1.msra.mxu0 %v540
  %578 = vmatprep.subr.mxu0 0.0
  %579 = vmatpush1.msra.mxu0 %v541
  %580 = vmatprep.subr.mxu0 0.0
  %581 = vmatpush1.msra.mxu0 %v542
  %582 = vmatprep.subr.mxu0 0.0
  %583 = vmatpush1.msra.mxu0 0.0
  %584 = vmatprep.subr.mxu0 0.0
  %585 = vmatpush1.msra.mxu0 0.0
  %586 = vmatprep.subr.mxu0 0.0
  %587 = vmatpush1.msra.mxu0 0.0
  %588 = vmatprep.subr.mxu0 0.0
  %589 = vmatpush1.msra.mxu0 0.0
  %590 = vmatprep.subr.mxu0 0.0
  %591 = vmatpush1.msra.mxu0 0.0
  %592 = vmatprep.subr.mxu0 0.0
  %593 = vmatpush1.msra.mxu0 0.0
  %594 = vmatprep.subr.mxu0 0.0
  %595 = vmatpush1.msra.mxu0 0.0
  %596 = vmatprep.subr.mxu0 0.0
  %597 = vmatpush1.msra.mxu0 0.0
  %598 = vmatprep.subr.mxu0 0.0
  %599 = vmatpush1.msra.mxu0 0.0
  %600 = vmatprep.subr.mxu0 0.0
  %601 = vmatpush1.msra.mxu0 0.0
  %602 = vmatprep.subr.mxu0 0.0
  %603 = vmatpush1.msra.mxu0 0.0
  %604 = vmatprep.subr.mxu0 0.0
  %605 = vmatpush1.msra.mxu0 0.0
  %606 = vmatprep.subr.mxu0 0.0
  %607 = vmatpush1.msra.mxu0 0.0
  %608 = vmatprep.subr.mxu0 0.0
  %609 = vmatpush1.msra.mxu0 0.0
  %610 = vmatprep.subr.mxu0 0.0
  %611 = vmatpush1.msra.mxu0 0.0
  %612 = vmatprep.subr.mxu0 0.0
  %613 = vmatpush1.msra.mxu0 0.0
  %614 = vmatprep.mubr.f32.mxu0 0.0
  %615 = vmatmul.mubr.f32.gmra.mrb[0].mxu0 %v526
  %v616 = vpop.f32.mrb[0].mxu0
  %v617 = vadd.f32 %v548, %v616
  %v618 = vpop.f32.mrb[0].mxu0
  %619 = vdwg.mxu0
  %620 = vst [vmem:[%s7] sm:$0xff] %v617
  // Predicated region
  $region30: #{fcn_forward.1} parent=0 // pred_check
    _
  $region31: #{fcn_forward.1} parent=0 // pred_check_branch
    %622 = sbr.rel (0) target = $region33
  $region32: #{fcn_forward.1} parent=0 // pred_region
    _
  $region33: #{fcn_forward.1} parent=0 // pred_fallthru
    _
  // Predicated region
  $region34: #{fcn_forward.1} parent=0 // pred_check
    _
  $region35: #{fcn_forward.1} parent=0 // pred_check_branch
    %624 = sbr.rel (0) target = $region37
  $region36: #{fcn_forward.1} parent=0 // pred_region
    _
  $region37: #{fcn_forward.1} parent=0 // pred_fallthru
    _

</llo_original>
